<compile_context>
chip_gen: v7x
topology: tpu7x:2x2x1
jax: 0.10.0
libtpu: 0.0.40
codegen_flags: <defaults>
</compile_context>

<pallas_src>
import numpy as np
import jax
import jax.numpy as jnp
from jax import lax
from jax.experimental import pallas as pl
from jax.experimental.pallas import tpu as pltpu  # noqa: F401  (TPU backend)

C_OUT = 32     # conv1 out_channels
KSIZE = 3      # conv1 kernel_size (stride=1, padding=1)
HIDDEN = 50    # fc1/fc2 width


def fused_forward_kernel(xf_ref, wc_ref, bc_ref, w1_ref, b1_ref,
                         w2_ref, b2_ref, wo_ref, bo_ref, o_ref):
    """conv(as one matmul)+ReLU -> fc1+ReLU -> fc2+ReLU -> output, all in VMEM.

    xf_ref: (B, Cin*L)          flattened input (ci-major, l-minor)
    wc_ref: (Cin*L, C_OUT*L)    banded conv matrix (built from conv weights)
    bc_ref: (1, C_OUT*L)        conv bias broadcast over positions
    w1_ref: (HIDDEN, C_OUT*L)   PyTorch Linear layout (contract last axis)
    w2_ref: (HIDDEN, HIDDEN)
    wo_ref: (NCLS, HIDDEN)
    o_ref : (B, NCLS)
    """
    nt = (((1,), (1,)), ((), ()))  # x @ W.T (PyTorch Linear), no materialized transpose

    # Conv1d(k=3, pad=1) + bias + ReLU; result is already the channel-major
    # flattened activation (B, C_OUT*L), lane-dense (512 = 4*128).
    flat = jnp.dot(xf_ref[...], wc_ref[...],
                   preferred_element_type=jnp.float32) + bc_ref[...]
    flat = jnp.maximum(flat, 0.0)

    # Dropout(0.1): identity in inference/eval mode.

    h = lax.dot_general(flat, w1_ref[...], nt,
                        preferred_element_type=jnp.float32) + b1_ref[...]
    h = jnp.maximum(h, 0.0)
    h = lax.dot_general(h, w2_ref[...], nt,
                        preferred_element_type=jnp.float32) + b2_ref[...]
    h = jnp.maximum(h, 0.0)
    o_ref[...] = lax.dot_general(h, wo_ref[...], nt,
                                 preferred_element_type=jnp.float32) + bo_ref[...]


def build_conv_matrix(conv_w, L):
    """(C_OUT, Cin, K) conv weights -> (Cin*L, C_OUT*L) banded matrix M such that
    x.reshape(B, Cin*L) @ M == flattened (channel-major) Conv1d(pad=1) output."""
    c_out, c_in, k = conv_w.shape
    pad = (k - 1) // 2
    j = jnp.arange(L)[:, None]            # input position
    l = jnp.arange(L)[None, :]            # output position
    tap = j - l + pad                     # tap index k = j - l + pad
    valid = (tap >= 0) & (tap < k)
    tap_c = jnp.clip(tap, 0, k - 1)       # (L, L)
    wt = conv_w.transpose(1, 0, 2)        # (Cin, C_OUT, K)
    band = wt[:, :, tap_c]                # (Cin, C_OUT, L, L) indexed [ci, co, j, l]
    band = jnp.where(valid[None, None], band, 0.0)
    # rows: ci*L + j, cols: co*L + l
    return band.transpose(0, 2, 1, 3).reshape(c_in * L, c_out * L)


def prepare_params(params, sequence_length):
    """One-time weight preparation (outside the per-call forward path)."""
    L = sequence_length
    return {
        "conv_mat": build_conv_matrix(params["conv_w"], L),
        "conv_b_flat": jnp.repeat(params["conv_b"], L)[None, :],
        "fc1_w": params["fc1_w"], "fc1_b": params["fc1_b"][None, :],
        "fc2_w": params["fc2_w"], "fc2_b": params["fc2_b"][None, :],
        "out_w": params["out_w"], "out_b": params["out_b"][None, :],
    }


def init_params(key, input_features, sequence_length, num_classes):
    ks = jax.random.split(key, 8)
    s = 0.1
    return {
        "conv_w": s * jax.random.normal(ks[0], (C_OUT, input_features, KSIZE), jnp.float32),
        "conv_b": s * jax.random.normal(ks[1], (C_OUT,), jnp.float32),
        "fc1_w":  s * jax.random.normal(ks[2], (HIDDEN, C_OUT * sequence_length), jnp.float32),
        "fc1_b":  s * jax.random.normal(ks[3], (HIDDEN,), jnp.float32),
        "fc2_w":  s * jax.random.normal(ks[4], (HIDDEN, HIDDEN), jnp.float32),
        "fc2_b":  s * jax.random.normal(ks[5], (HIDDEN,), jnp.float32),
        "out_w":  s * jax.random.normal(ks[6], (num_classes, HIDDEN), jnp.float32),
        "out_b":  s * jax.random.normal(ks[7], (num_classes,), jnp.float32),
    }


def delivery_cnn_forward(x, kp):
    """x: (B, Cin, L) NCL input (PyTorch Conv1d layout); kp from prepare_params."""
    B, c_in, L = x.shape
    num_classes = kp["out_w"].shape[0]
    x_flat = x.reshape(B, c_in * L)   # free row-major reshape (ci-major, l-minor)

    operands = (x_flat, kp["conv_mat"], kp["conv_b_flat"],
                kp["fc1_w"], kp["fc1_b"], kp["fc2_w"], kp["fc2_b"],
                kp["out_w"], kp["out_b"])

    return pl.pallas_call(
        fused_forward_kernel,
        out_shape=jax.ShapeDtypeStruct((B, num_classes), jnp.float32),
        in_specs=[pl.BlockSpec(op.shape, lambda: (0, 0)) for op in operands],
        out_specs=pl.BlockSpec((B, num_classes), lambda: (0, 0)),
    )(*operands)


def reference_forward(x, p):
    """Pure-JAX reference replicating the PyTorch forward (eval mode)."""
    conv = jax.lax.conv_general_dilated(
        x, p["conv_w"], window_strides=(1,), padding=((1, 1),),
        dimension_numbers=("NCH", "OIH", "NCH"),
    ) + p["conv_b"][None, :, None]
    h = jnp.maximum(conv, 0.0)
    h = h.reshape(x.shape[0], -1)
    h = jnp.maximum(h @ p["fc1_w"].T + p["fc1_b"], 0.0)
    h = jnp.maximum(h @ p["fc2_w"].T + p["fc2_b"], 0.0)
    return h @ p["out_w"].T + p["out_b"]


if __name__ == "__main__":
    batch, input_features, sequence_length, num_classes = 2, 4, 16, 5

    key = jax.random.PRNGKey(0)
    k_x, k_p = jax.random.split(key)
    x = jax.random.normal(k_x, (batch, input_features, sequence_length), jnp.float32)
    params = init_params(k_p, input_features, sequence_length, num_classes)

    # One-time weight prep (banded conv matrix, bias broadcasts).
    kernel_params = jax.tree_util.tree_map(jax.block_until_ready,
                                           prepare_params(params, sequence_length))

    fwd = jax.jit(delivery_cnn_forward)
    out = jax.block_until_ready(fwd(x, kernel_params))

    ref = jax.block_until_ready(reference_forward(x, params))
    assert out.shape == (batch, num_classes)
    np.testing.assert_allclose(np.asarray(out), np.asarray(ref), rtol=1e-4, atol=1e-4)

    print("KERNEL_OK")
</pallas_src>

<mosaic_0001>
module attributes {stable_mosaic.version = 11 : i64} {
  func.func @fused_forward_kernel(%arg0: memref<2x64xf32, #tpu.memory_space<vmem>>, %arg1: memref<64x512xf32, #tpu.memory_space<vmem>>, %arg2: memref<1x512xf32, #tpu.memory_space<vmem>>, %arg3: memref<50x512xf32, #tpu.memory_space<vmem>>, %arg4: memref<1x50xf32, #tpu.memory_space<vmem>>, %arg5: memref<50x50xf32, #tpu.memory_space<vmem>>, %arg6: memref<1x50xf32, #tpu.memory_space<vmem>>, %arg7: memref<5x50xf32, #tpu.memory_space<vmem>>, %arg8: memref<1x5xf32, #tpu.memory_space<vmem>>, %arg9: memref<2x5xf32, #tpu.memory_space<vmem>>) attributes {dimension_semantics = [], scalar_prefetch = 0 : i64, scratch_operands = 0 : i64, tpu.core_type = #tpu.core_type<tc>} {
    %c0 = arith.constant 0 : index
    %c0_0 = arith.constant 0 : index
    %0 = vector.load %arg0[%c0, %c0_0] : memref<2x64xf32, #tpu.memory_space<vmem>>, vector<2x64xf32>
    %c0_1 = arith.constant 0 : index
    %c0_2 = arith.constant 0 : index
    %1 = vector.load %arg1[%c0_1, %c0_2] : memref<64x512xf32, #tpu.memory_space<vmem>>, vector<64x512xf32>
    %cst = arith.constant dense<0.000000e+00> : vector<2x512xf32>
    %2 = tpu.matmul %0, %1, %cst {dimension_numbers = #tpu.dot_dimension_numbers<[1], [0], [0], [1], [0, 0, 1, 1], [], []>} : vector<2x64xf32>, vector<64x512xf32>, vector<2x512xf32> -> vector<2x512xf32>
    %c0_3 = arith.constant 0 : index
    %c0_4 = arith.constant 0 : index
    %3 = vector.load %arg2[%c0_3, %c0_4] : memref<1x512xf32, #tpu.memory_space<vmem>>, vector<1x512xf32>
    %4 = vector.broadcast %3 : vector<1x512xf32> to vector<2x512xf32>
    %5 = arith.addf %2, %4 : vector<2x512xf32>
    %cst_5 = arith.constant 0.000000e+00 : f32
    %6 = vector.broadcast %cst_5 : f32 to vector<2x512xf32>
    %7 = arith.maximumf %5, %6 : vector<2x512xf32>
    %c0_6 = arith.constant 0 : index
    %c0_7 = arith.constant 0 : index
    %8 = vector.load %arg3[%c0_6, %c0_7] : memref<50x512xf32, #tpu.memory_space<vmem>>, vector<50x512xf32>
    %cst_8 = arith.constant dense<0.000000e+00> : vector<2x50xf32>
    %9 = tpu.matmul %7, %8, %cst_8 {dimension_numbers = #tpu.dot_dimension_numbers<[1], [1], [0], [0], [0, 0, 1, 0], [], []>} : vector<2x512xf32>, vector<50x512xf32>, vector<2x50xf32> -> vector<2x50xf32>
    %c0_9 = arith.constant 0 : index
    %c0_10 = arith.constant 0 : index
    %10 = vector.load %arg4[%c0_9, %c0_10] : memref<1x50xf32, #tpu.memory_space<vmem>>, vector<1x50xf32>
    %11 = vector.broadcast %10 : vector<1x50xf32> to vector<2x50xf32>
    %12 = arith.addf %9, %11 : vector<2x50xf32>
    %cst_11 = arith.constant 0.000000e+00 : f32
    %13 = vector.broadcast %cst_11 : f32 to vector<2x50xf32>
    %14 = arith.maximumf %12, %13 : vector<2x50xf32>
    %c0_12 = arith.constant 0 : index
    %c0_13 = arith.constant 0 : index
    %15 = vector.load %arg5[%c0_12, %c0_13] : memref<50x50xf32, #tpu.memory_space<vmem>>, vector<50x50xf32>
    %cst_14 = arith.constant dense<0.000000e+00> : vector<2x50xf32>
    %16 = tpu.matmul %14, %15, %cst_14 {dimension_numbers = #tpu.dot_dimension_numbers<[1], [1], [0], [0], [0, 0, 1, 0], [], []>} : vector<2x50xf32>, vector<50x50xf32>, vector<2x50xf32> -> vector<2x50xf32>
    %c0_15 = arith.constant 0 : index
    %c0_16 = arith.constant 0 : index
    %17 = vector.load %arg6[%c0_15, %c0_16] : memref<1x50xf32, #tpu.memory_space<vmem>>, vector<1x50xf32>
    %18 = vector.broadcast %17 : vector<1x50xf32> to vector<2x50xf32>
    %19 = arith.addf %16, %18 : vector<2x50xf32>
    %cst_17 = arith.constant 0.000000e+00 : f32
    %20 = vector.broadcast %cst_17 : f32 to vector<2x50xf32>
    %21 = arith.maximumf %19, %20 : vector<2x50xf32>
    %c0_18 = arith.constant 0 : index
    %c0_19 = arith.constant 0 : index
    %22 = vector.load %arg7[%c0_18, %c0_19] : memref<5x50xf32, #tpu.memory_space<vmem>>, vector<5x50xf32>
    %cst_20 = arith.constant dense<0.000000e+00> : vector<2x5xf32>
    %23 = tpu.matmul %21, %22, %cst_20 {dimension_numbers = #tpu.dot_dimension_numbers<[1], [1], [0], [0], [0, 0, 1, 0], [], []>} : vector<2x50xf32>, vector<5x50xf32>, vector<2x5xf32> -> vector<2x5xf32>
    %c0_21 = arith.constant 0 : index
    %c0_22 = arith.constant 0 : index
    %24 = vector.load %arg8[%c0_21, %c0_22] : memref<1x5xf32, #tpu.memory_space<vmem>>, vector<1x5xf32>
    %25 = vector.broadcast %24 : vector<1x5xf32> to vector<2x5xf32>
    %26 = arith.addf %23, %25 : vector<2x5xf32>
    %c0_23 = arith.constant 0 : index
    %c0_24 = arith.constant 0 : index
    %27 = vector.load %arg9[%c0_23, %c0_24] : memref<2x5xf32, #tpu.memory_space<vmem>>, vector<2x5xf32>
    tpu.vector_store %arg9[%c0_23, %c0_24], %26 {strides = array<i32>} : memref<2x5xf32, #tpu.memory_space<vmem>>, vector<2x5xf32>,
    return
  }
}

</mosaic_0001>

<llo_original>
// kernel: delivery_cnn_forward.1
$region0: #{delivery_cnn_forward.1}
  #allocation0 [shape = 'u32[]', space=smem, size = 0x4, offset = 0x4, fixed_abs, tag = 'smem constant byte address 0x4 - core index']
  #allocation1 [shape = 'u32[144,128]{1,0:T(1,128)}', space=vmem, size = 0x12000, scoped, tag = 'internal scratch']
  %s0 = inlined_call_operand.vmem [shape: f32[2,64], index: 0, kind: input, shape index: {}]
  %s1 = inlined_call_operand.hbm [shape: f32[64,512], index: 1, kind: input, shape index: {}]
  %s2 = inlined_call_operand.vmem [shape: f32[1,512], index: 2, kind: input, shape index: {}]
  %s3 = inlined_call_operand.hbm [shape: f32[50,512], index: 3, kind: input, shape index: {}]
  %s4 = inlined_call_operand.vmem [shape: f32[1,50], index: 4, kind: input, shape index: {}]
  %s5 = inlined_call_operand.hbm [shape: f32[50,50], index: 5, kind: input, shape index: {}]
  %s6 = inlined_call_operand.vmem [shape: f32[1,50], index: 6, kind: input, shape index: {}]
  %s7 = inlined_call_operand.vmem [shape: f32[5,50], index: 7, kind: input, shape index: {}]
  %s8 = inlined_call_operand.vmem [shape: f32[1,5], index: 8, kind: input, shape index: {}]
  %s9 = inlined_call_operand.hbm [shape: f32[2,5], index: 9, kind: output, shape index: {}]
  %s10 = sld [smem:[#allocation0]]
  $region58: #{delivery_cnn_forward.1} parent=0
    _
  %s12 = ssub.s32 1, %s10
  %s13 = scalar_select 0, %s12, %s10
  $region1: #{delivery_cnn_forward.1} parent=0
    #allocation2 [shape = 'u8[131072]{0}', space=vmem, size = 0x20000, scoped, tag = 'input window, operand 1, single buffered']
    #allocation3 [shape = 's32[1]{0}', space=sflag, size = 0x4, scoped, tag = 'scoped memory for delivery_cnn_forward.1']
    #allocation4 [shape = 's32[1]{0}', space=sflag, size = 0x4, scoped, tag = 'scoped memory for delivery_cnn_forward.1']
    #allocation5 [shape = 'u8[114688]{0}', space=vmem, size = 0x1c000, scoped, tag = 'input window, operand 3, single buffered']
    #allocation6 [shape = 's32[1]{0}', space=sflag, size = 0x4, scoped, tag = 'scoped memory for delivery_cnn_forward.1']
    #allocation7 [shape = 'u8[28672]{0}', space=vmem, size = 0x7000, scoped, tag = 'input window, operand 5, single buffered']
    #allocation8 [shape = 'u8[1024]{0}', space=vmem, size = 0x400, scoped, tag = 'output window, operand 0, single buffered']
    %14 = vsyncpa [#allocation3], 0
    %15 = vsyncpa [#allocation6], 0
    %16 = vsyncpa [#allocation4], 0
    // Predicated region
    $region2: #{delivery_cnn_forward.1} parent=1 // pred_check
      _
    $region3: #{delivery_cnn_forward.1} parent=1 // pred_check_branch
      %18 = sbr.rel (0) target = $region5
    $region4: #{delivery_cnn_forward.1} parent=1 // pred_region
      _
    $region5: #{delivery_cnn_forward.1} parent=1 // pred_fallthru
      _
    // Predicated region
    $region6: #{delivery_cnn_forward.1} parent=1 // pred_check
      _
    $region7: #{delivery_cnn_forward.1} parent=1 // pred_check_branch
      %20 = sbr.rel (0) target = $region9
    $region8: #{delivery_cnn_forward.1} parent=1 // pred_region
      %s22 = ssub.s32 4096, 4096
      %23 = vsyncadd [#allocation3], %s22
      %s24 = sshll.u32 [#allocation2], 4
      %s25 = int_to_ptr.vmem [resolvable:$true] %s24
      %30 = dma.hbm_to_vmem [thread:$0]  %s1, 4096, %s25, [#allocation3], 512, 512, 32
    $region9: #{delivery_cnn_forward.1} parent=1 // pred_fallthru
      _
    // Predicated region
    $region10: #{delivery_cnn_forward.1} parent=1 // pred_check
      _
    $region11: #{delivery_cnn_forward.1} parent=1 // pred_check_branch
      %32 = sbr.rel (0) target = $region13
    $region12: #{delivery_cnn_forward.1} parent=1 // pred_region
      _
    $region13: #{delivery_cnn_forward.1} parent=1 // pred_fallthru
      _
    // Predicated region
    $region14: #{delivery_cnn_forward.1} parent=1 // pred_check
      _
    $region15: #{delivery_cnn_forward.1} parent=1 // pred_check_branch
      %34 = sbr.rel (0) target = $region17
    $region16: #{delivery_cnn_forward.1} parent=1 // pred_region
      %s36 = ssub.s32 3584, 3584
      %37 = vsyncadd [#allocation6], %s36
      %s38 = sshll.u32 [#allocation5], 4
      %s39 = int_to_ptr.vmem [resolvable:$true] %s38
      %44 = dma.hbm_to_vmem [thread:$0]  %s3, 3584, %s39, [#allocation6], 512, 512, 32
    $region17: #{delivery_cnn_forward.1} parent=1 // pred_fallthru
      _
    // Predicated region
    $region18: #{delivery_cnn_forward.1} parent=1 // pred_check
      _
    $region19: #{delivery_cnn_forward.1} parent=1 // pred_check_branch
      %46 = sbr.rel (0) target = $region21
    $region20: #{delivery_cnn_forward.1} parent=1 // pred_region
      _
    $region21: #{delivery_cnn_forward.1} parent=1 // pred_fallthru
      _
    // Predicated region
    $region22: #{delivery_cnn_forward.1} parent=1 // pred_check
      _
    $region23: #{delivery_cnn_forward.1} parent=1 // pred_check_branch
      %48 = sbr.rel (0) target = $region25
    $region24: #{delivery_cnn_forward.1} parent=1 // pred_region
      %s50 = ssub.s32 896, 896
      %51 = vsyncadd [#allocation6], %s50
      %s52 = sshll.u32 [#allocation7], 4
      %s53 = int_to_ptr.vmem [resolvable:$true] %s52
      %58 = dma.hbm_to_vmem [thread:$0]  %s5, 896, %s53, [#allocation6], 128, 128, 8
    $region25: #{delivery_cnn_forward.1} parent=1 // pred_fallthru
      _
    // Predicated region
    $region26: #{delivery_cnn_forward.1} parent=1 // pred_check
      _
    $region27: #{delivery_cnn_forward.1} parent=1 // pred_check_branch
      %60 = sbr.rel (0) target = $region29
    $region28: #{delivery_cnn_forward.1} parent=1 // pred_region
      _
    $region29: #{delivery_cnn_forward.1} parent=1 // pred_fallthru
      _
    // Predicated region
    $region30: #{delivery_cnn_forward.1} parent=1 // pred_check
      _
    $region31: #{delivery_cnn_forward.1} parent=1 // pred_check_branch
      %62 = sbr.rel (0) target = $region33
    $region32: #{delivery_cnn_forward.1} parent=1 // pred_region
      _
    $region33: #{delivery_cnn_forward.1} parent=1 // pred_fallthru
      _
    // Predicated region
    $region34: #{delivery_cnn_forward.1} parent=1 // pred_check
      _
    $region35: #{delivery_cnn_forward.1} parent=1 // pred_check_branch
      %64 = sbr.rel (0) target = $region37
    $region36: #{delivery_cnn_forward.1} parent=1 // pred_region
      _
    $region37: #{delivery_cnn_forward.1} parent=1 // pred_fallthru
      _
    // Predicated region
    $region38: #{delivery_cnn_forward.1} parent=1 // pred_check
      _
    $region39: #{delivery_cnn_forward.1} parent=1 // pred_check_branch
      %66 = sbr.rel (0) target = $region41
    $region40: #{delivery_cnn_forward.1} parent=1 // pred_region
      %67 = dma.done [#allocation3], 4096
    $region41: #{delivery_cnn_forward.1} parent=1 // pred_fallthru
      _
    // Predicated region
    $region42: #{delivery_cnn_forward.1} parent=1 // pred_check
      _
    $region43: #{delivery_cnn_forward.1} parent=1 // pred_check_branch
      %69 = sbr.rel (0) target = $region45
    $region44: #{delivery_cnn_forward.1} parent=1 // pred_region
      %70 = dma.done [#allocation6], 3584
    $region45: #{delivery_cnn_forward.1} parent=1 // pred_fallthru
      _
    // Predicated region
    $region46: #{delivery_cnn_forward.1} parent=1 // pred_check
      _
    $region47: #{delivery_cnn_forward.1} parent=1 // pred_check_branch
      %72 = sbr.rel (0) target = $region49
    $region48: #{delivery_cnn_forward.1} parent=1 // pred_region
      %73 = dma.done [#allocation6], 896
    $region49: #{delivery_cnn_forward.1} parent=1 // pred_fallthru
      _
    %v74 = vld [vmem:[%s0] sm:$0x3]
    %v75 = vld [vmem:[#allocation2] sm:$0xff]
    %v76 = vld [vmem:[#allocation2 + $0x8] sm:$0xff]
    %v77 = vld [vmem:[#allocation2 + $0x10] sm:$0xff]
    %v78 = vld [vmem:[#allocation2 + $0x18] sm:$0xff]
    %v79 = vld [vmem:[#allocation2 + $0x20] sm:$0xff]
    %v80 = vld [vmem:[#allocation2 + $0x28] sm:$0xff]
    %v81 = vld [vmem:[#allocation2 + $0x30] sm:$0xff]
    %v82 = vld [vmem:[#allocation2 + $0x38] sm:$0xff]
    %v83 = vld [vmem:[#allocation2 + $0x40] sm:$0xff]
    %v84 = vld [vmem:[#allocation2 + $0x48] sm:$0xff]
    %v85 = vld [vmem:[#allocation2 + $0x50] sm:$0xff]
    %v86 = vld [vmem:[#allocation2 + $0x58] sm:$0xff]
    %v87 = vld [vmem:[#allocation2 + $0x60] sm:$0xff]
    %v88 = vld [vmem:[#allocation2 + $0x68] sm:$0xff]
    %v89 = vld [vmem:[#allocation2 + $0x70] sm:$0xff]
    %v90 = vld [vmem:[#allocation2 + $0x78] sm:$0xff]
    %v91 = vld [vmem:[#allocation2 + $0x80] sm:$0xff]
    %v92 = vld [vmem:[#allocation2 + $0x88] sm:$0xff]
    %v93 = vld [vmem:[#allocation2 + $0x90] sm:$0xff]
    %v94 = vld [vmem:[#allocation2 + $0x98] sm:$0xff]
    %v95 = vld [vmem:[#allocation2 + $0xa0] sm:$0xff]
    %v96 = vld [vmem:[#allocation2 + $0xa8] sm:$0xff]
    %v97 = vld [vmem:[#allocation2 + $0xb0] sm:$0xff]
    %v98 = vld [vmem:[#allocation2 + $0xb8] sm:$0xff]
    %v99 = vld [vmem:[#allocation2 + $0xc0] sm:$0xff]
    %v100 = vld [vmem:[#allocation2 + $0xc8] sm:$0xff]
    %v101 = vld [vmem:[#allocation2 + $0xd0] sm:$0xff]
    %v102 = vld [vmem:[#allocation2 + $0xd8] sm:$0xff]
    %v103 = vld [vmem:[#allocation2 + $0xe0] sm:$0xff]
    %v104 = vld [vmem:[#allocation2 + $0xe8] sm:$0xff]
    %v105 = vld [vmem:[#allocation2 + $0xf0] sm:$0xff]
    %v106 = vld [vmem:[#allocation2 + $0xf8] sm:$0xff]
    %v107 = vld [vmem:[%s2] sm:$0xf]
    %v109 = vlaneseq
    %v110 = vshrl.u32 %v109, 7
    %v111 = vsub.s32 0, %v110
    %v112 = vrot.slane %v107, %v111
    %v113 = vlaneseq
    %v114 = vshrl.u32 %v113, 7
    %v115 = vsub.s32 1, %v114
    %v116 = vrot.slane %v107, %v115
    %v117 = vlaneseq
    %v118 = vshrl.u32 %v117, 7
    %v119 = vsub.s32 2, %v118
    %v120 = vrot.slane %v107, %v119
    %v121 = vlaneseq
    %v122 = vshrl.u32 %v121, 7
    %v123 = vsub.s32 3, %v122
    %v124 = vrot.slane %v107, %v123
    %vm129 = vcmask 523264
    %v131 = vsel %vm129, %v74, 0
    %133 = vmatprep.subr.mxu0 %v76
    %134 = vmatpush1.msra.mxu0 %v75
    %135 = vmatprep.subr.mxu0 %v80
    %136 = vmatpush1.msra.mxu0 %v79
    %137 = vmatprep.subr.mxu0 %v84
    %138 = vmatpush1.msra.mxu0 %v83
    %139 = vmatprep.subr.mxu0 %v88
    %140 = vmatpush1.msra.mxu0 %v87
    %141 = vmatprep.subr.mxu0 %v92
    %142 = vmatpush1.msra.mxu0 %v91
    %143 = vmatprep.subr.mxu0 %v96
    %144 = vmatpush1.msra.mxu0 %v95
    %145 = vmatprep.subr.mxu0 %v100
    %146 = vmatpush1.msra.mxu0 %v99
    %147 = vmatprep.subr.mxu0 %v104
    %148 = vmatpush1.msra.mxu0 %v103
    %149 = vmatprep.subr.mxu0 0.0
    %150 = vmatpush1.msra.mxu0 0.0
    %151 = vmatprep.subr.mxu0 0.0
    %152 = vmatpush1.msra.mxu0 0.0
    %153 = vmatprep.subr.mxu0 0.0
    %154 = vmatpush1.msra.mxu0 0.0
    %155 = vmatprep.subr.mxu0 0.0
    %156 = vmatpush1.msra.mxu0 0.0
    %157 = vmatprep.subr.mxu0 0.0
    %158 = vmatpush1.msra.mxu0 0.0
    %159 = vmatprep.subr.mxu0 0.0
    %160 = vmatpush1.msra.mxu0 0.0
    %161 = vmatprep.subr.mxu0 0.0
    %162 = vmatpush1.msra.mxu0 0.0
    %163 = vmatprep.subr.mxu0 0.0
    %164 = vmatpush1.msra.mxu0 0.0
    %165 = vmatprep.subr.mxu0 0.0
    %166 = vmatpush1.msra.mxu0 0.0
    %167 = vmatprep.subr.mxu0 0.0
    %168 = vmatpush1.msra.mxu0 0.0
    %169 = vmatprep.subr.mxu0 0.0
    %170 = vmatpush1.msra.mxu0 0.0
    %171 = vmatprep.subr.mxu0 0.0
    %172 = vmatpush1.msra.mxu0 0.0
    %173 = vmatprep.subr.mxu0 0.0
    %174 = vmatpush1.msra.mxu0 0.0
    %175 = vmatprep.subr.mxu0 0.0
    %176 = vmatpush1.msra.mxu0 0.0
    %177 = vmatprep.subr.mxu0 0.0
    %178 = vmatpush1.msra.mxu0 0.0
    %179 = vmatprep.subr.mxu0 0.0
    %180 = vmatpush1.msra.mxu0 0.0
    %181 = vmatprep.subr.mxu0 0.0
    %182 = vmatpush1.msra.mxu0 0.0
    %183 = vmatprep.subr.mxu0 0.0
    %184 = vmatpush1.msra.mxu0 0.0
    %185 = vmatprep.subr.mxu0 0.0
    %186 = vmatpush1.msra.mxu0 0.0
    %187 = vmatprep.subr.mxu0 0.0
    %188 = vmatpush1.msra.mxu0 0.0
    %189 = vmatprep.subr.mxu0 0.0
    %190 = vmatpush1.msra.mxu0 0.0
    %191 = vmatprep.subr.mxu0 0.0
    %192 = vmatpush1.msra.mxu0 0.0
    %193 = vmatprep.subr.mxu0 0.0
    %194 = vmatpush1.msra.mxu0 0.0
    %195 = vmatprep.subr.mxu0 0.0
    %196 = vmatpush1.msra.mxu0 0.0
    %197 = vmatprep.mubr.f32.mxu0 0.0
    %198 = vmatmul.mubr.f32.gmra.mrb[0].mxu0 %v131
    %v199 = vpop.f32.mrb[0].mxu0
    %v200 = vadd.f32 %v112, %v199
    %v201 = vpop.f32.mrb[0].mxu0
    %v202 = vadd.f32 %v116, %v201
    %203 = vdwg.mxu0
    %204 = vmatprep.subr.mxu0 %v78
    %205 = vmatpush1.msra.mxu0 %v77
    %206 = vmatprep.subr.mxu0 %v82
    %207 = vmatpush1.msra.mxu0 %v81
    %208 = vmatprep.subr.mxu0 %v86
    %209 = vmatpush1.msra.mxu0 %v85
    %210 = vmatprep.subr.mxu0 %v90
    %211 = vmatpush1.msra.mxu0 %v89
    %212 = vmatprep.subr.mxu0 %v94
    %213 = vmatpush1.msra.mxu0 %v93
    %214 = vmatprep.subr.mxu0 %v98
    %215 = vmatpush1.msra.mxu0 %v97
    %216 = vmatprep.subr.mxu0 %v102
    %217 = vmatpush1.msra.mxu0 %v101
    %218 = vmatprep.subr.mxu0 %v106
    %219 = vmatpush1.msra.mxu0 %v105
    %220 = vmatprep.subr.mxu0 0.0
    %221 = vmatpush1.msra.mxu0 0.0
    %222 = vmatprep.subr.mxu0 0.0
    %223 = vmatpush1.msra.mxu0 0.0
    %224 = vmatprep.subr.mxu0 0.0
    %225 = vmatpush1.msra.mxu0 0.0
    %226 = vmatprep.subr.mxu0 0.0
    %227 = vmatpush1.msra.mxu0 0.0
    %228 = vmatprep.subr.mxu0 0.0
    %229 = vmatpush1.msra.mxu0 0.0
    %230 = vmatprep.subr.mxu0 0.0
    %231 = vmatpush1.msra.mxu0 0.0
    %232 = vmatprep.subr.mxu0 0.0
    %233 = vmatpush1.msra.mxu0 0.0
    %234 = vmatprep.subr.mxu0 0.0
    %235 = vmatpush1.msra.mxu0 0.0
    %236 = vmatprep.subr.mxu0 0.0
    %237 = vmatpush1.msra.mxu0 0.0
    %238 = vmatprep.subr.mxu0 0.0
    %239 = vmatpush1.msra.mxu0 0.0
    %240 = vmatprep.subr.mxu0 0.0
    %241 = vmatpush1.msra.mxu0 0.0
    %242 = vmatprep.subr.mxu0 0.0
    %243 = vmatpush1.msra.mxu0 0.0
    %244 = vmatprep.subr.mxu0 0.0
    %245 = vmatpush1.msra.mxu0 0.0
    %246 = vmatprep.subr.mxu0 0.0
    %247 = vmatpush1.msra.mxu0 0.0
    %248 = vmatprep.subr.mxu0 0.0
    %249 = vmatpush1.msra.mxu0 0.0
    %250 = vmatprep.subr.mxu0 0.0
    %251 = vmatpush1.msra.mxu0 0.0
    %252 = vmatprep.subr.mxu0 0.0
    %253 = vmatpush1.msra.mxu0 0.0
    %254 = vmatprep.subr.mxu0 0.0
    %255 = vmatpush1.msra.mxu0 0.0
    %256 = vmatprep.subr.mxu0 0.0
    %257 = vmatpush1.msra.mxu0 0.0
    %258 = vmatprep.subr.mxu0 0.0
    %259 = vmatpush1.msra.mxu0 0.0
    %260 = vmatprep.subr.mxu0 0.0
    %261 = vmatpush1.msra.mxu0 0.0
    %262 = vmatprep.subr.mxu0 0.0
    %263 = vmatpush1.msra.mxu0 0.0
    %264 = vmatprep.subr.mxu0 0.0
    %265 = vmatpush1.msra.mxu0 0.0
    %266 = vmatprep.subr.mxu0 0.0
    %267 = vmatpush1.msra.mxu0 0.0
    %268 = vmatprep.mubr.f32.mxu0 0.0
    %269 = vmatmul.mubr.f32.gmra.mrb[0].mxu0 %v131
    %v270 = vpop.f32.mrb[0].mxu0
    %v271 = vadd.f32 %v120, %v270
    %v272 = vpop.f32.mrb[0].mxu0
    %v273 = vadd.f32 %v124, %v272
    %274 = vdwg.mxu0
    %v275 = vmax.f32 %v200, 0.0
    %v276 = vmax.f32 %v202, 0.0
    %v277 = vmax.f32 %v271, 0.0
    %v278 = vmax.f32 %v273, 0.0
    %v279 = vld [vmem:[#allocation5] sm:$0xff]
    %v280 = vld [vmem:[#allocation5 + $0x8] sm:$0xff]
    %v281 = vld [vmem:[#allocation5 + $0x10] sm:$0xff]
    %v282 = vld [vmem:[#allocation5 + $0x18] sm:$0xff]
    %v283 = vld [vmem:[#allocation5 + $0x20] sm:$0xff]
    %v284 = vld [vmem:[#allocation5 + $0x28] sm:$0xff]
    %v285 = vld [vmem:[#allocation5 + $0x30] sm:$0xff]
    %v286 = vld [vmem:[#allocation5 + $0x38] sm:$0xff]
    %v287 = vld [vmem:[#allocation5 + $0x40] sm:$0xff]
    %v288 = vld [vmem:[#allocation5 + $0x48] sm:$0xff]
    %v289 = vld [vmem:[#allocation5 + $0x50] sm:$0xff]
    %v290 = vld [vmem:[#allocation5 + $0x58] sm:$0xff]
    %v291 = vld [vmem:[#allocation5 + $0x60] sm:$0xff]
    %v292 = vld [vmem:[#allocation5 + $0x68] sm:$0xff]
    %v293 = vld [vmem:[#allocation5 + $0x70] sm:$0xff]
    %v294 = vld [vmem:[#allocation5 + $0x78] sm:$0xff]
    %v295 = vld [vmem:[#allocation5 + $0x80] sm:$0xff]
    %v296 = vld [vmem:[#allocation5 + $0x88] sm:$0xff]
    %v297 = vld [vmem:[#allocation5 + $0x90] sm:$0xff]
    %v298 = vld [vmem:[#allocation5 + $0x98] sm:$0xff]
    %v299 = vld [vmem:[#allocation5 + $0xa0] sm:$0xff]
    %v300 = vld [vmem:[#allocation5 + $0xa8] sm:$0xff]
    %v301 = vld [vmem:[#allocation5 + $0xb0] sm:$0xff]
    %v302 = vld [vmem:[#allocation5 + $0xb8] sm:$0xff]
    %v303 = vld [vmem:[#allocation5 + $0xc0] sm:$0x3]
    %v304 = vld [vmem:[#allocation5 + $0xc8] sm:$0x3]
    %v305 = vld [vmem:[#allocation5 + $0xd0] sm:$0x3]
    %v306 = vld [vmem:[#allocation5 + $0xd8] sm:$0x3]
    %v307 = vld [vmem:[%s4] sm:$0x1]
    %v309 = vlaneseq
    %v310 = vshrl.u32 %v309, 7
    %v311 = vsub.s32 0, %v310
    %v312 = vrot.slane %v307, %v311
    %314 = vmatprep.subr.mxu0 %v280
    %315 = vmatpush1.xpose.msra.mxu0 %v279
    %316 = vmatprep.subr.mxu0 %v284
    %317 = vmatpush1.xpose.msra.mxu0 %v283
    %318 = vmatprep.subr.mxu0 %v288
    %319 = vmatpush1.xpose.msra.mxu0 %v287
    %320 = vmatprep.subr.mxu0 %v292
    %321 = vmatpush1.xpose.msra.mxu0 %v291
    %322 = vmatprep.subr.mxu0 %v296
    %323 = vmatpush1.xpose.msra.mxu0 %v295
    %324 = vmatprep.subr.mxu0 %v300
    %325 = vmatpush1.xpose.msra.mxu0 %v299
    %326 = vmatprep.subr.mxu0 %v304
    %327 = vmatpush1.xpose.msra.mxu0 %v303
    %328 = vmatprep.subr.mxu0 0.0
    %329 = vmatpush1.xpose.msra.mxu0 0.0
    %330 = vmatprep.subr.mxu0 0.0
    %331 = vmatpush1.xpose.msra.mxu0 0.0
    %332 = vmatprep.subr.mxu0 0.0
    %333 = vmatpush1.xpose.msra.mxu0 0.0
    %334 = vmatprep.subr.mxu0 0.0
    %335 = vmatpush1.xpose.msra.mxu0 0.0
    %336 = vmatprep.subr.mxu0 0.0
    %337 = vmatpush1.xpose.msra.mxu0 0.0
    %338 = vmatprep.subr.mxu0 0.0
    %339 = vmatpush1.xpose.msra.mxu0 0.0
    %340 = vmatprep.subr.mxu0 0.0
    %341 = vmatpush1.xpose.msra.mxu0 0.0
    %342 = vmatprep.subr.mxu0 0.0
    %343 = vmatpush1.xpose.msra.mxu0 0.0
    %344 = vmatprep.subr.mxu0 0.0
    %345 = vmatpush1.xpose.msra.mxu0 0.0
    %346 = vmatprep.subr.mxu0 0.0
    %347 = vmatpush1.xpose.msra.mxu0 0.0
    %348 = vmatprep.subr.mxu0 0.0
    %349 = vmatpush1.xpose.msra.mxu0 0.0
    %350 = vmatprep.subr.mxu0 0.0
    %351 = vmatpush1.xpose.msra.mxu0 0.0
    %352 = vmatprep.subr.mxu0 0.0
    %353 = vmatpush1.xpose.msra.mxu0 0.0
    %354 = vmatprep.subr.mxu0 0.0
    %355 = vmatpush1.xpose.msra.mxu0 0.0
    %356 = vmatprep.subr.mxu0 0.0
    %357 = vmatpush1.xpose.msra.mxu0 0.0
    %358 = vmatprep.subr.mxu0 0.0
    %359 = vmatpush1.xpose.msra.mxu0 0.0
    %360 = vmatprep.subr.mxu0 0.0
    %361 = vmatpush1.xpose.msra.mxu0 0.0
    %362 = vmatprep.subr.mxu0 0.0
    %363 = vmatpush1.xpose.msra.mxu0 0.0
    %364 = vmatprep.subr.mxu0 0.0
    %365 = vmatpush1.xpose.msra.mxu0 0.0
    %366 = vmatprep.subr.mxu0 0.0
    %367 = vmatpush1.xpose.msra.mxu0 0.0
    %368 = vmatprep.subr.mxu0 0.0
    %369 = vmatpush1.xpose.msra.mxu0 0.0
    %370 = vmatprep.subr.mxu0 0.0
    %371 = vmatpush1.xpose.msra.mxu0 0.0
    %372 = vmatprep.subr.mxu0 0.0
    %373 = vmatpush1.xpose.msra.mxu0 0.0
    %374 = vmatprep.subr.mxu0 0.0
    %375 = vmatpush1.xpose.msra.mxu0 0.0
    %376 = vmatprep.subr.mxu0 0.0
    %377 = vmatpush1.xpose.msra.mxu0 0.0
    %378 = vmatprep.mubr.f32.mxu0 %v276
    %379 = vmatmul.mubr.f32.gmra.mrb[0].mxu0 %v275
    %v380 = vpop.f32.mrb[0].mxu0
    %v381 = vadd.f32 %v312, %v380
    %v382 = vpop.f32.mrb[0].mxu0
    %383 = vdwg.mxu0
    %384 = vmatprep.subr.mxu0 %v282
    %385 = vmatpush1.xpose.msra.mxu0 %v281
    %386 = vmatprep.subr.mxu0 %v286
    %387 = vmatpush1.xpose.msra.mxu0 %v285
    %388 = vmatprep.subr.mxu0 %v290
    %389 = vmatpush1.xpose.msra.mxu0 %v289
    %390 = vmatprep.subr.mxu0 %v294
    %391 = vmatpush1.xpose.msra.mxu0 %v293
    %392 = vmatprep.subr.mxu0 %v298
    %393 = vmatpush1.xpose.msra.mxu0 %v297
    %394 = vmatprep.subr.mxu0 %v302
    %395 = vmatpush1.xpose.msra.mxu0 %v301
    %396 = vmatprep.subr.mxu0 %v306
    %397 = vmatpush1.xpose.msra.mxu0 %v305
    %398 = vmatprep.subr.mxu0 0.0
    %399 = vmatpush1.xpose.msra.mxu0 0.0
    %400 = vmatprep.subr.mxu0 0.0
    %401 = vmatpush1.xpose.msra.mxu0 0.0
    %402 = vmatprep.subr.mxu0 0.0
    %403 = vmatpush1.xpose.msra.mxu0 0.0
    %404 = vmatprep.subr.mxu0 0.0
    %405 = vmatpush1.xpose.msra.mxu0 0.0
    %406 = vmatprep.subr.mxu0 0.0
    %407 = vmatpush1.xpose.msra.mxu0 0.0
    %408 = vmatprep.subr.mxu0 0.0
    %409 = vmatpush1.xpose.msra.mxu0 0.0
    %410 = vmatprep.subr.mxu0 0.0
    %411 = vmatpush1.xpose.msra.mxu0 0.0
    %412 = vmatprep.subr.mxu0 0.0
    %413 = vmatpush1.xpose.msra.mxu0 0.0
    %414 = vmatprep.subr.mxu0 0.0
    %415 = vmatpush1.xpose.msra.mxu0 0.0
    %416 = vmatprep.subr.mxu0 0.0
    %417 = vmatpush1.xpose.msra.mxu0 0.0
    %418 = vmatprep.subr.mxu0 0.0
    %419 = vmatpush1.xpose.msra.mxu0 0.0
    %420 = vmatprep.subr.mxu0 0.0
    %421 = vmatpush1.xpose.msra.mxu0 0.0
    %422 = vmatprep.subr.mxu0 0.0
    %423 = vmatpush1.xpose.msra.mxu0 0.0
    %424 = vmatprep.subr.mxu0 0.0
    %425 = vmatpush1.xpose.msra.mxu0 0.0
    %426 = vmatprep.subr.mxu0 0.0
    %427 = vmatpush1.xpose.msra.mxu0 0.0
    %428 = vmatprep.subr.mxu0 0.0
    %429 = vmatpush1.xpose.msra.mxu0 0.0
    %430 = vmatprep.subr.mxu0 0.0
    %431 = vmatpush1.xpose.msra.mxu0 0.0
    %432 = vmatprep.subr.mxu0 0.0
    %433 = vmatpush1.xpose.msra.mxu0 0.0
    %434 = vmatprep.subr.mxu0 0.0
    %435 = vmatpush1.xpose.msra.mxu0 0.0
    %436 = vmatprep.subr.mxu0 0.0
    %437 = vmatpush1.xpose.msra.mxu0 0.0
    %438 = vmatprep.subr.mxu0 0.0
    %439 = vmatpush1.xpose.msra.mxu0 0.0
    %440 = vmatprep.subr.mxu0 0.0
    %441 = vmatpush1.xpose.msra.mxu0 0.0
    %442 = vmatprep.subr.mxu0 0.0
    %443 = vmatpush1.xpose.msra.mxu0 0.0
    %444 = vmatprep.subr.mxu0 0.0
    %445 = vmatpush1.xpose.msra.mxu0 0.0
    %446 = vmatprep.subr.mxu0 0.0
    %447 = vmatpush1.xpose.msra.mxu0 0.0
    %448 = vmatprep.mubr.f32.mxu0 %v278
    %449 = vmatmul.mubr.f32.gmra.mrb[0].mxu0 %v277
    %v450 = vpop.f32.mrb[0].mxu0
    %v451 = vadd.f32 %v381, %v450
    %v452 = vpop.f32.mrb[0].mxu0
    %453 = vdwg.mxu0
    %v454 = vmax.f32 %v451, 0.0
    %v455 = vld [vmem:[#allocation7] sm:$0xff]
    %v456 = vld [vmem:[#allocation7 + $0x8] sm:$0xff]
    %v457 = vld [vmem:[#allocation7 + $0x10] sm:$0xff]
    %v458 = vld [vmem:[#allocation7 + $0x18] sm:$0xff]
    %v459 = vld [vmem:[#allocation7 + $0x20] sm:$0xff]
    %v460 = vld [vmem:[#allocation7 + $0x28] sm:$0xff]
    %v461 = vld [vmem:[#allocation7 + $0x30] sm:$0x3]
    %v462 = vld [vmem:[%s6] sm:$0x1]
    %v464 = vlaneseq
    %v465 = vshrl.u32 %v464, 7
    %v466 = vsub.s32 0, %v465
    %v467 = vrot.slane %v462, %v466
    %vm469 = vcmask 408576
    %v471 = vsel %vm469, %v454, 0
    %v474 = vsel %vm469, %v455, 0
    %v477 = vsel %vm469, %v456, 0
    %v480 = vsel %vm469, %v457, 0
    %v483 = vsel %vm469, %v458, 0
    %v486 = vsel %vm469, %v459, 0
    %v489 = vsel %vm469, %v460, 0
    %v492 = vsel %vm469, %v461, 0
    %494 = vmatprep.subr.mxu0 0.0
    %495 = vmatpush1.xpose.msra.mxu0 %v474
    %496 = vmatprep.subr.mxu0 0.0
    %497 = vmatpush1.xpose.msra.mxu0 %v477
    %498 = vmatprep.subr.mxu0 0.0
    %499 = vmatpush1.xpose.msra.mxu0 %v480
    %500 = vmatprep.subr.mxu0 0.0
    %501 = vmatpush1.xpose.msra.mxu0 %v483
    %502 = vmatprep.subr.mxu0 0.0
    %503 = vmatpush1.xpose.msra.mxu0 %v486
    %504 = vmatprep.subr.mxu0 0.0
    %505 = vmatpush1.xpose.msra.mxu0 %v489
    %506 = vmatprep.subr.mxu0 0.0
    %507 = vmatpush1.xpose.msra.mxu0 %v492
    %508 = vmatprep.subr.mxu0 0.0
    %509 = vmatpush1.xpose.msra.mxu0 0.0
    %510 = vmatprep.subr.mxu0 0.0
    %511 = vmatpush1.xpose.msra.mxu0 0.0
    %512 = vmatprep.subr.mxu0 0.0
    %513 = vmatpush1.xpose.msra.mxu0 0.0
    %514 = vmatprep.subr.mxu0 0.0
    %515 = vmatpush1.xpose.msra.mxu0 0.0
    %516 = vmatprep.subr.mxu0 0.0
    %517 = vmatpush1.xpose.msra.mxu0 0.0
    %518 = vmatprep.subr.mxu0 0.0
    %519 = vmatpush1.xpose.msra.mxu0 0.0
    %520 = vmatprep.subr.mxu0 0.0
    %521 = vmatpush1.xpose.msra.mxu0 0.0
    %522 = vmatprep.subr.mxu0 0.0
    %523 = vmatpush1.xpose.msra.mxu0 0.0
    %524 = vmatprep.subr.mxu0 0.0
    %525 = vmatpush1.xpose.msra.mxu0 0.0
    %526 = vmatprep.subr.mxu0 0.0
    %527 = vmatpush1.xpose.msra.mxu0 0.0
    %528 = vmatprep.subr.mxu0 0.0
    %529 = vmatpush1.xpose.msra.mxu0 0.0
    %530 = vmatprep.subr.mxu0 0.0
    %531 = vmatpush1.xpose.msra.mxu0 0.0
    %532 = vmatprep.subr.mxu0 0.0
    %533 = vmatpush1.xpose.msra.mxu0 0.0
    %534 = vmatprep.subr.mxu0 0.0
    %535 = vmatpush1.xpose.msra.mxu0 0.0
    %536 = vmatprep.subr.mxu0 0.0
    %537 = vmatpush1.xpose.msra.mxu0 0.0
    %538 = vmatprep.subr.mxu0 0.0
    %539 = vmatpush1.xpose.msra.mxu0 0.0
    %540 = vmatprep.subr.mxu0 0.0
    %541 = vmatpush1.xpose.msra.mxu0 0.0
    %542 = vmatprep.subr.mxu0 0.0
    %543 = vmatpush1.xpose.msra.mxu0 0.0
    %544 = vmatprep.subr.mxu0 0.0
    %545 = vmatpush1.xpose.msra.mxu0 0.0
    %546 = vmatprep.subr.mxu0 0.0
    %547 = vmatpush1.xpose.msra.mxu0 0.0
    %548 = vmatprep.subr.mxu0 0.0
    %549 = vmatpush1.xpose.msra.mxu0 0.0
    %550 = vmatprep.subr.mxu0 0.0
    %551 = vmatpush1.xpose.msra.mxu0 0.0
    %552 = vmatprep.subr.mxu0 0.0
    %553 = vmatpush1.xpose.msra.mxu0 0.0
    %554 = vmatprep.subr.mxu0 0.0
    %555 = vmatpush1.xpose.msra.mxu0 0.0
    %556 = vmatprep.subr.mxu0 0.0
    %557 = vmatpush1.xpose.msra.mxu0 0.0
    %558 = vmatprep.mubr.f32.mxu0 0.0
    %559 = vmatmul.mubr.f32.gmra.mrb[0].mxu0 %v471
    %v560 = vpop.f32.mrb[0].mxu0
    %v561 = vadd.f32 %v467, %v560
    %v562 = vpop.f32.mrb[0].mxu0
    %563 = vdwg.mxu0
    %v564 = vmax.f32 %v561, 0.0
    %v565 = vld [vmem:[%s7] sm:$0x1f]
    %v566 = vld [vmem:[%s8] sm:$0x1]
    %v568 = vlaneseq
    %v569 = vshrl.u32 %v568, 7
    %v570 = vsub.s32 0, %v569
    %v571 = vrot.slane %v566, %v570
    %v574 = vsel %vm469, %v564, 0
    %v577 = vsel %vm469, %v565, 0
    %579 = vmatprep.subr.mxu0 0.0
    %580 = vmatpush1.xpose.msra.mxu0 %v577
    %581 = vmatprep.subr.mxu0 0.0
    %582 = vmatpush1.xpose.msra.mxu0 0.0
    %583 = vmatprep.subr.mxu0 0.0
    %584 = vmatpush1.xpose.msra.mxu0 0.0
    %585 = vmatprep.subr.mxu0 0.0
    %586 = vmatpush1.xpose.msra.mxu0 0.0
    %587 = vmatprep.subr.mxu0 0.0
    %588 = vmatpush1.xpose.msra.mxu0 0.0
    %589 = vmatprep.subr.mxu0 0.0
    %590 = vmatpush1.xpose.msra.mxu0 0.0
    %591 = vmatprep.subr.mxu0 0.0
    %592 = vmatpush1.xpose.msra.mxu0 0.0
    %593 = vmatprep.subr.mxu0 0.0
    %594 = vmatpush1.xpose.msra.mxu0 0.0
    %595 = vmatprep.subr.mxu0 0.0
    %596 = vmatpush1.xpose.msra.mxu0 0.0
    %597 = vmatprep.subr.mxu0 0.0
    %598 = vmatpush1.xpose.msra.mxu0 0.0
    %599 = vmatprep.subr.mxu0 0.0
    %600 = vmatpush1.xpose.msra.mxu0 0.0
    %601 = vmatprep.subr.mxu0 0.0
    %602 = vmatpush1.xpose.msra.mxu0 0.0
    %603 = vmatprep.subr.mxu0 0.0
    %604 = vmatpush1.xpose.msra.mxu0 0.0
    %605 = vmatprep.subr.mxu0 0.0
    %606 = vmatpush1.xpose.msra.mxu0 0.0
    %607 = vmatprep.subr.mxu0 0.0
    %608 = vmatpush1.xpose.msra.mxu0 0.0
    %609 = vmatprep.subr.mxu0 0.0
    %610 = vmatpush1.xpose.msra.mxu0 0.0
    %611 = vmatprep.subr.mxu0 0.0
    %612 = vmatpush1.xpose.msra.mxu0 0.0
    %613 = vmatprep.subr.mxu0 0.0
    %614 = vmatpush1.xpose.msra.mxu0 0.0
    %615 = vmatprep.subr.mxu0 0.0
    %616 = vmatpush1.xpose.msra.mxu0 0.0
    %617 = vmatprep.subr.mxu0 0.0
    %618 = vmatpush1.xpose.msra.mxu0 0.0
    %619 = vmatprep.subr.mxu0 0.0
    %620 = vmatpush1.xpose.msra.mxu0 0.0
    %621 = vmatprep.subr.mxu0 0.0
    %622 = vmatpush1.xpose.msra.mxu0 0.0
    %623 = vmatprep.subr.mxu0 0.0
    %624 = vmatpush1.xpose.msra.mxu0 0.0
    %625 = vmatprep.subr.mxu0 0.0
    %626 = vmatpush1.xpose.msra.mxu0 0.0
    %627 = vmatprep.subr.mxu0 0.0
    %628 = vmatpush1.xpose.msra.mxu0 0.0
    %629 = vmatprep.subr.mxu0 0.0
    %630 = vmatpush1.xpose.msra.mxu0 0.0
    %631 = vmatprep.subr.mxu0 0.0
    %632 = vmatpush1.xpose.msra.mxu0 0.0
    %633 = vmatprep.subr.mxu0 0.0
    %634 = vmatpush1.xpose.msra.mxu0 0.0
    %635 = vmatprep.subr.mxu0 0.0
    %636 = vmatpush1.xpose.msra.mxu0 0.0
    %637 = vmatprep.subr.mxu0 0.0
    %638 = vmatpush1.xpose.msra.mxu0 0.0
    %639 = vmatprep.subr.mxu0 0.0
    %640 = vmatpush1.xpose.msra.mxu0 0.0
    %641 = vmatprep.subr.mxu0 0.0
    %642 = vmatpush1.xpose.msra.mxu0 0.0
    %643 = vmatprep.mubr.f32.mxu0 0.0
    %644 = vmatmul.mubr.f32.gmra.mrb[0].mxu0 %v574
    %v645 = vpop.f32.mrb[0].mxu0
    %v646 = vadd.f32 %v571, %v645
    %v647 = vpop.f32.mrb[0].mxu0
    %648 = vdwg.mxu0
    %vm649 = vcmask 33792
    %650 = vst.msk [vmem:[#allocation8] sm:$0x3] %vm649, %v646
    // Predicated region
    $region50: #{delivery_cnn_forward.1} parent=1 // pred_check
      _
    $region51: #{delivery_cnn_forward.1} parent=1 // pred_check_branch
      %652 = sbr.rel (0) target = $region53
    $region52: #{delivery_cnn_forward.1} parent=1 // pred_region
      %s654 = ssub.s32 32, 32
      %655 = vsyncadd [#allocation4], %s654
      %s657 = sshll.u32 [#allocation8], 4
      %s658 = int_to_ptr.vmem [resolvable:$true] %s657
      %660 = dma.vmem_to_hbm [thread:$0]  %s658, 32, %s9, [#allocation4]
    $region53: #{delivery_cnn_forward.1} parent=1 // pred_fallthru
      _
    // Predicated region
    $region54: #{delivery_cnn_forward.1} parent=1 // pred_check
      _
    $region55: #{delivery_cnn_forward.1} parent=1 // pred_check_branch
      %662 = sbr.rel (0) target = $region57
    $region56: #{delivery_cnn_forward.1} parent=1 // pred_region
      %663 = dma.done [#allocation4], 32
    $region57: #{delivery_cnn_forward.1} parent=1 // pred_fallthru
      _
    %664 = vsyncpa [#allocation3], 1
    %665 = vsyncpa [#allocation6], 1
    %666 = vsyncpa [#allocation4], 1

</llo_original>
